<compile_context>
chip_gen: v5e
topology: v5e:2x2
jax: 0.10.0
libtpu: 0.0.40
codegen_flags: <defaults>
</compile_context>

<pallas_src>
import jax
import jax.numpy as jnp
from jax.experimental import pallas as pl
from jax.experimental.pallas import tpu as pltpu


# ~4 MiB per block -> ~16 MiB total with in+out double buffering.
_BLOCK_BYTES = 4 * 1024 * 1024


def _copy_kernel(x_ref, o_ref):
    # Pure element-wise passthrough on the current VMEM tile.
    o_ref[...] = x_ref[...]


def _sublane_min(dtype) -> int:
    # Minimum second-to-last tile dim for packed dtypes: f32 -> 8, bf16 -> 16,
    # int8/fp8 -> 32.
    itemsize = jnp.dtype(dtype).itemsize
    return max(8, 32 // max(itemsize, 1))


def _round_up(x: int, m: int) -> int:
    return ((x + m - 1) // m) * m


def _pick_lane_cols(total: int, sub: int):
    # Widest lane-dense (multiple-of-128) last dim that divides the element
    # count and still leaves at least one full sublane group of rows.
    for lc in (4096, 2048, 1024, 512, 256, 128):
        if total % lc == 0 and (total // lc) >= sub:
            return lc
    return None


def _block_rows(rows: int, lane_cols: int, itemsize: int, sub: int) -> int:
    # Byte-budget block height, rounded to the sublane multiple for this dtype.
    br = max(sub, (_BLOCK_BYTES // (lane_cols * itemsize)) // sub * sub)
    if rows >= 2 * sub:
        # Keep at least 2 grid blocks so the "parallel" axis can shard across
        # both v7x TensorCores (no-op on single-TC v5e/v6e).
        br = min(br, _round_up(pl.cdiv(rows, 2), sub))
    if br >= rows:
        br = rows  # single full-height block (full-dim block is always legal)
    return br


def _tiled_copy(x2d: jax.Array) -> jax.Array:
    """HBM-roofline tiled copy of a lane-dense 2-D slab [rows, k*128]."""
    rows, lane_cols = x2d.shape
    itemsize = jnp.dtype(x2d.dtype).itemsize
    sub = _sublane_min(x2d.dtype)
    br = _block_rows(rows, lane_cols, itemsize, sub)
    grid = (pl.cdiv(rows, br),)  # ragged last block handled by Pallas

    return pl.pallas_call(
        _copy_kernel,
        out_shape=jax.ShapeDtypeStruct(x2d.shape, x2d.dtype),
        grid=grid,
        in_specs=[pl.BlockSpec((br, lane_cols), lambda i: (i, 0))],
        out_specs=pl.BlockSpec((br, lane_cols), lambda i: (i, 0)),
        compiler_params=pltpu.CompilerParams(
            dimension_semantics=("parallel",),
            # ~16 MiB working set + headroom; well under v7x's 64 MiB physical
            # VMEM and keeps double-buffering alive on v5e's 16 MiB default.
            vmem_limit_bytes=32 * 1024 * 1024,
        ),
    )(x2d)


def rnn_forward(x: jax.Array, *, use_pallas_copy: bool = False) -> jax.Array:
    """Pallas equivalent of RNN.forward (a no-op module): identity on x.

    The module defines no parameters and its forward performs no computation,
    so the optimal implementation is to return x unchanged (zero HBM traffic).
    Set use_pallas_copy=True to route through the tiled Pallas copy kernel
    instead (kept to demonstrate / exercise the kernel path).
    """
    if not use_pallas_copy:
        return x

    orig_shape = x.shape
    total = int(x.size)
    sub = _sublane_min(x.dtype)

    lane_cols = _pick_lane_cols(total, sub)
    if lane_cols is not None:
        x2d = x.reshape(total // lane_cols, lane_cols)
        return _tiled_copy(x2d).reshape(orig_shape)

    # Fallback for non-128-multiple (or very small) element counts: pad flat
    # to a lane-dense layout and reuse the same tiled, pipelined path instead
    # of a single full-array VMEM block (which could exceed VMEM).
    lane_cols = 512
    padded = _round_up(max(total, 1), lane_cols * sub)
    flat = jnp.pad(x.reshape(-1), (0, padded - total))
    out2d = _tiled_copy(flat.reshape(padded // lane_cols, lane_cols))
    return out2d.reshape(-1)[:total].reshape(orig_shape)


if __name__ == "__main__":
    key = jax.random.PRNGKey(0)
    # Small NCHW-style input consistent with the (stub) module.
    x = jax.random.normal(key, (2, 4, 16, 16), dtype=jnp.float32)

    # Default (optimal) path: identity, zero HBM traffic.
    y_fast = rnn_forward(x)
    jax.block_until_ready(y_fast)

    # Kernel path: lane-dense tiled Pallas copy, exercised once on TPU.
    y_kernel = rnn_forward(x, use_pallas_copy=True)
    jax.block_until_ready(y_kernel)

    assert y_fast.shape == x.shape and y_fast.dtype == x.dtype
    assert y_kernel.shape == x.shape and y_kernel.dtype == x.dtype
    assert bool(jnp.array_equal(y_fast, x))
    assert bool(jnp.array_equal(y_kernel, x))

    # Also exercise the padded fallback (element count not a multiple of 128).
    x_odd = jax.random.normal(jax.random.PRNGKey(1), (3, 5, 7), dtype=jnp.float32)
    y_odd = rnn_forward(x_odd, use_pallas_copy=True)
    jax.block_until_ready(y_odd)
    assert bool(jnp.array_equal(y_odd, x_odd))

    print("KERNEL_OK")
</pallas_src>

<mosaic_0001>
module attributes {stable_mosaic.version = 11 : i64} {
  func.func @_copy_kernel(%arg0: i32, %arg1: memref<8x256xf32, #tpu.memory_space<vmem>>, %arg2: memref<8x256xf32, #tpu.memory_space<vmem>>) attributes {dimension_semantics = [#tpu.dimension_semantics<parallel>], iteration_bounds = array<i64: 1>, scalar_prefetch = 0 : i64, scratch_operands = 0 : i64, tpu.core_type = #tpu.core_type<tc>, window_params = [{transform_indices = @transform_0, window_bounds = array<i64: 8, 256>}, {transform_indices = @transform_1, window_bounds = array<i64: 8, 256>}]} {
    %c0 = arith.constant 0 : index
    %c0_0 = arith.constant 0 : index
    %0 = vector.load %arg1[%c0, %c0_0] : memref<8x256xf32, #tpu.memory_space<vmem>>, vector<8x256xf32>
    %c0_1 = arith.constant 0 : index
    %c0_2 = arith.constant 0 : index
    %1 = vector.load %arg2[%c0_1, %c0_2] : memref<8x256xf32, #tpu.memory_space<vmem>>, vector<8x256xf32>
    tpu.vector_store %arg2[%c0_1, %c0_2], %0 {strides = array<i32>} : memref<8x256xf32, #tpu.memory_space<vmem>>, vector<8x256xf32>,
    return
  }
  func.func @transform_0(%arg0: i32) -> (i32, i32) {
    %c0_i32 = arith.constant 0 : i32
    %c0_i32_0 = arith.constant 0 : i32
    return %arg0, %c0_i32 : i32, i32
  }
  func.func @transform_1(%arg0: i32) -> (i32, i32) {
    %c0_i32 = arith.constant 0 : i32
    %c0_i32_0 = arith.constant 0 : i32
    return %arg0, %c0_i32 : i32, i32
  }
}

</mosaic_0001>

<llo_original>
// kernel: tpu_custom_call.1
$region0: #{tpu_custom_call.1}
  #allocation0 [shape = 'u32[]', space=smem, size = 0x4, offset = 0x4, fixed_abs, tag = 'smem constant byte address 0x4 - core index']
  #allocation1 [shape = 'u32[72,128]{1,0:T(1,128)}', space=vmem, size = 0x9000, scoped, tag = 'internal scratch']
  %s0 = inlined_call_operand.hbm [shape: f32[8,256], index: 0, kind: input, shape index: {}]
  %s1 = inlined_call_operand.hbm [shape: f32[8,256], index: 1, kind: output, shape index: {}]
  %s2 = sld [smem:[#allocation0]]
  $region18: #{tpu_custom_call.1} parent=0
    _
  %s4 = ssub.s32 1, %s2
  %s5 = scalar_select 0, %s4, %s2
  $region1: #{tpu_custom_call.1} parent=0
    #allocation2 [shape = 'u8[8192]{0}', space=vmem, size = 0x2000, scoped, tag = 'input window, operand 0, single buffered']
    #allocation3 [shape = 's32[1]{0}', space=sflag, size = 0x4, scoped, tag = 'scoped memory for tpu_custom_call.1']
    #allocation4 [shape = 's32[1]{0}', space=sflag, size = 0x4, scoped, tag = 'scoped memory for tpu_custom_call.1']
    #allocation5 [shape = 'u8[8192]{0}', space=vmem, size = 0x2000, scoped, tag = 'output window, operand 0, single buffered']
    %6 = vsyncpa [#allocation3], 0
    %7 = vsyncpa [#allocation4], 0
    // Predicated region
    $region2: #{tpu_custom_call.1} parent=1 // pred_check
      _
    $region3: #{tpu_custom_call.1} parent=1 // pred_check_branch
      %9 = sbr.rel (0) target = $region5
    $region4: #{tpu_custom_call.1} parent=1 // pred_region
      %11 = vsyncadd [#allocation3], 0
      %s13 = sshll.u32 %s0, 4
      %s14 = int_to_ptr.hbm [resolvable:$true] %s13
      %s15 = sshll.u32 [#allocation2], 4
      %s16 = int_to_ptr.vmem [resolvable:$true] %s15
      %18 = dma.hbm_to_vmem [thread:$0]  %s14, 256, %s16, [#allocation3]
    $region5: #{tpu_custom_call.1} parent=1 // pred_fallthru
      _
    // Predicated region
    $region6: #{tpu_custom_call.1} parent=1 // pred_check
      _
    $region7: #{tpu_custom_call.1} parent=1 // pred_check_branch
      %20 = sbr.rel (0) target = $region9
    $region8: #{tpu_custom_call.1} parent=1 // pred_region
      %22 = dma.done [#allocation3], 256
    $region9: #{tpu_custom_call.1} parent=1 // pred_fallthru
      _
    %v23 = vld [vmem:[#allocation2] sm:$0xff]
    %v24 = vld [vmem:[#allocation2 + $0x8] sm:$0xff]
    %25 = vst [vmem:[#allocation5] sm:$0xff] %v23
    %26 = vst [vmem:[#allocation5 + $0x8] sm:$0xff] %v24
    // Predicated region
    $region10: #{tpu_custom_call.1} parent=1 // pred_check
      _
    $region11: #{tpu_custom_call.1} parent=1 // pred_check_branch
      %28 = sbr.rel (0) target = $region13
    $region12: #{tpu_custom_call.1} parent=1 // pred_region
      %30 = vsyncadd [#allocation4], 0
      %s32 = sshll.u32 [#allocation5], 4
      %s33 = int_to_ptr.vmem [resolvable:$true] %s32
      %s34 = sshll.u32 %s1, 4
      %s35 = int_to_ptr.hbm [resolvable:$true] %s34
      %37 = dma.vmem_to_hbm [thread:$0]  %s33, 256, %s35, [#allocation4]
    $region13: #{tpu_custom_call.1} parent=1 // pred_fallthru
      _
    // Predicated region
    $region14: #{tpu_custom_call.1} parent=1 // pred_check
      _
    $region15: #{tpu_custom_call.1} parent=1 // pred_check_branch
      %39 = sbr.rel (0) target = $region17
    $region16: #{tpu_custom_call.1} parent=1 // pred_region
      %41 = dma.done [#allocation4], 256
    $region17: #{tpu_custom_call.1} parent=1 // pred_fallthru
      _
    %42 = vsyncpa [#allocation3], 1
    %43 = vsyncpa [#allocation4], 1

</llo_original>
